<compile_context>
chip_gen: v6e
topology: v6e:2x2x1
jax: 0.10.0
libtpu: 0.0.40
codegen_flags: <defaults>
</compile_context>

<pallas_src>
import functools

import jax
import jax.numpy as jnp
import numpy as np
from jax.experimental import pallas as pl
from jax.experimental.pallas import tpu as pltpu

_ALPHA = 2  # exponent on (1 - pred) / pred
_BETA = 4   # exponent on (1 - gt)

_LANES = 128
_DEFAULT_BLOCK_ROWS = 1024  # (1024, 128) f32 = 512 KiB per input block.


def _round_up(x, m):
    return ((x + m - 1) // m) * m


def _make_kernel(block_rows, rows, blocks_per_slice, has_mask, need_row_mask):
    """Build the focal-loss accumulation kernel for a given static config."""

    def kernel(*refs):
        if has_mask:
            pred_ref, gt_ref, mask_ref, out_ref = refs
        else:
            pred_ref, gt_ref, out_ref = refs

        c = pl.program_id(0)  # core/slice index ("parallel")
        i = pl.program_id(1)  # reduction step within the slice ("arbitrary")

        @pl.when(i == 0)
        def _init():
            out_ref[...] = jnp.zeros_like(out_ref)

        pred = pred_ref[...].astype(jnp.float32)
        gt = gt_ref[...].astype(jnp.float32)

        pos_inds = gt == 1.0
        neg_inds = gt < 1.0

        if has_mask:
            m = mask_ref[...] != 0.0
            pos_inds = pos_inds & m
            neg_inds = neg_inds & m

        if need_row_mask:
            # Blocks that hang past the end of the (rows, 128) slab (partial
            # last real block, or clamped overhang blocks of the second
            # slice) hold undefined / duplicated data: drop those rows from
            # both index sets so they contribute exactly zero.
            logical_block = c * blocks_per_slice + i
            row_ids = (
                jax.lax.broadcasted_iota(jnp.int32, (block_rows, _LANES), 0)
                + logical_block * block_rows
            )
            valid = row_ids < rows
            pos_inds = pos_inds & valid
            neg_inds = neg_inds & valid

        one_minus_pred = 1.0 - pred
        neg_weights = (1.0 - gt) ** _BETA

        pos_loss = jnp.where(
            pos_inds, jnp.log(pred) * one_minus_pred ** _ALPHA, 0.0
        )
        neg_loss = jnp.where(
            neg_inds,
            jnp.log(one_minus_pred) * pred ** _ALPHA * neg_weights,
            0.0,
        )
        npos = pos_inds.astype(jnp.float32)

        # Per-step partial reduction to one 128-lane row per quantity (mostly
        # cross-vreg VPU adds), accumulated into the VMEM-resident output
        # block.  Row 0: pos_loss_sum, row 1: neg_loss_sum, row 2: num_pos.
        out_ref[0:1, :] = out_ref[0:1, :] + jnp.sum(
            pos_loss, axis=0, keepdims=True
        )
        out_ref[1:2, :] = out_ref[1:2, :] + jnp.sum(
            neg_loss, axis=0, keepdims=True
        )
        out_ref[2:3, :] = out_ref[2:3, :] + jnp.sum(
            npos, axis=0, keepdims=True
        )

    return kernel


def _to_lanes(x, fill):
    """View x as a lane-dense (rows, 128) f32 slab.

    The reshape is free for contiguous f32 inputs whose numel is a multiple of
    128 (the common heatmap case); otherwise at most 127 fill elements are
    appended.  Fill values are chosen so padding contributes exactly zero to
    every sum (pred=0.5, gt=2.0 -> neither pos nor neg, mask=0 -> excluded).
    """
    flat = jnp.reshape(x, (-1,)).astype(jnp.float32)
    n = flat.shape[0]
    rem = (-n) % _LANES
    if rem:
        flat = jnp.concatenate(
            [flat, jnp.full((rem,), fill, dtype=jnp.float32)]
        )
    return flat.reshape(-1, _LANES)


@functools.partial(jax.jit, static_argnames=("has_mask",))
def _focal_heatmap_loss_impl(pred, gt, mask, has_mask):
    pred2d = _to_lanes(pred, 0.5)
    gt2d = _to_lanes(gt, 2.0)
    inputs = [pred2d, gt2d]
    if has_mask:
        inputs.append(_to_lanes(mask, 0.0))

    rows = pred2d.shape[0]
    block_rows = min(_DEFAULT_BLOCK_ROWS, _round_up(rows, 8))
    total_blocks = pl.cdiv(rows, block_rows)

    # Split the reduction across two per-core partial accumulators when there
    # is more than one block of work (no-op cost on single-TC chips, lets the
    # two v7x TensorCores each stream half of HBM).
    n_slices = 2 if total_blocks >= 2 else 1
    blocks_per_slice = pl.cdiv(total_blocks, n_slices)
    grid = (n_slices, blocks_per_slice)

    coverage = n_slices * blocks_per_slice * block_rows
    need_row_mask = coverage != rows

    if n_slices * blocks_per_slice == total_blocks:
        def in_index_map(c, i):
            return (c * blocks_per_slice + i, 0)
    else:
        # Overhang logical blocks (only possible for the last slice) are
        # clamped onto the last real block; their rows are masked out
        # in-kernel, so the duplicated read contributes nothing.
        last_block = total_blocks - 1

        def in_index_map(c, i):
            return (jnp.minimum(c * blocks_per_slice + i, last_block), 0)

    block_spec = pl.BlockSpec((block_rows, _LANES), in_index_map)
    in_specs = [block_spec] * len(inputs)
    # Lane-dense (3, 128) partial-sum block per slice, resident in VMEM across
    # the "arbitrary" reduction axis.
    out_spec = pl.BlockSpec((None, 3, _LANES), lambda c, i: (c, 0, 0))

    kernel = _make_kernel(
        block_rows, rows, blocks_per_slice, has_mask, need_row_mask
    )

    out = pl.pallas_call(
        kernel,
        out_shape=jax.ShapeDtypeStruct((n_slices, 3, _LANES), jnp.float32),
        grid_spec=pltpu.PrefetchScalarGridSpec(
            num_scalar_prefetch=0,
            grid=grid,
            in_specs=in_specs,
            out_specs=out_spec,
        ),
        compiler_params=pltpu.CompilerParams(
            dimension_semantics=("parallel", "arbitrary"),
            vmem_limit_bytes=32 * 1024 * 1024,
        ),
    )(*inputs)

    totals = jnp.sum(out, axis=(0, 2))  # (3,): pos_sum, neg_sum, num_pos
    pos_sum = totals[0]
    neg_sum = totals[1]
    num_pos = totals[2]

    return jnp.where(
        num_pos == 0.0,
        0.0 - neg_sum,
        0.0 - (pos_sum + neg_sum) / jnp.maximum(num_pos, 1.0),
    )


def focal_heatmap_loss(pred, gt, mask=None):
    """JAX/Pallas equivalent of FocalHeatmapLoss(alpha=2, beta=4).forward."""
    has_mask = mask is not None
    if mask is None:
        mask = jnp.zeros((), dtype=jnp.float32)  # unused placeholder
    return _focal_heatmap_loss_impl(pred, gt, mask, has_mask)


def _reference_loss(pred, gt, mask=None):
    """Pure-JAX reference matching the PyTorch module."""
    pred = pred.astype(jnp.float32)
    gt = gt.astype(jnp.float32)
    pos_inds = gt == 1.0
    neg_inds = gt < 1.0
    if mask is not None:
        m = mask.astype(bool)
        pos_inds = pos_inds & m
        neg_inds = neg_inds & m
    neg_weights = (1.0 - gt) ** _BETA
    pos_loss = jnp.where(pos_inds, jnp.log(pred) * (1.0 - pred) ** _ALPHA, 0.0)
    neg_loss = jnp.where(
        neg_inds, jnp.log(1.0 - pred) * pred ** _ALPHA * neg_weights, 0.0
    )
    num_pos = jnp.sum(pos_inds.astype(jnp.float32))
    pos_sum = jnp.sum(pos_loss)
    neg_sum = jnp.sum(neg_loss)
    return jnp.where(
        num_pos == 0.0,
        -neg_sum,
        -(pos_sum + neg_sum) / jnp.maximum(num_pos, 1.0),
    )


if __name__ == "__main__":
    key = jax.random.PRNGKey(0)

    def make_inputs(k, shape, peak_frac=0.02):
        k_pred, k_gt, k_peaks, k_mask = jax.random.split(k, 4)
        p = jax.random.uniform(k_pred, shape, jnp.float32, 0.01, 0.99)
        g = jax.random.uniform(k_gt, shape, jnp.float32, 0.0, 0.9)
        if peak_frac > 0:
            peaks = jax.random.uniform(k_peaks, shape) < peak_frac
            g = jnp.where(peaks, jnp.float32(1.0), g)
        mk = (jax.random.uniform(k_mask, shape) < 0.8).astype(jnp.float32)
        return p, g, mk

    keys = jax.random.split(key, 6)

    # 1) Small NCHW heatmap, no mask (typical module call; single block).
    pred, gt, mask = make_inputs(keys[0], (2, 4, 16, 16))
    out = jax.block_until_ready(focal_heatmap_loss(pred, gt))
    ref = jax.block_until_ready(_reference_loss(pred, gt))
    np.testing.assert_allclose(np.asarray(out), np.asarray(ref),
                               rtol=1e-4, atol=1e-4)

    # 2) Same inputs with a mask (exercises in-kernel mask path).
    out = jax.block_until_ready(focal_heatmap_loss(pred, gt, mask))
    ref = jax.block_until_ready(_reference_loss(pred, gt, mask))
    np.testing.assert_allclose(np.asarray(out), np.asarray(ref),
                               rtol=1e-4, atol=1e-4)

    # 3) Awkward shape: numel not a multiple of 128 and rows not a multiple of
    #    the block -> lane padding + in-kernel row masking.
    pred, gt, mask = make_inputs(keys[1], (1, 3, 13, 21))
    out = jax.block_until_ready(focal_heatmap_loss(pred, gt, mask))
    ref = jax.block_until_ready(_reference_loss(pred, gt, mask))
    np.testing.assert_allclose(np.asarray(out), np.asarray(ref),
                               rtol=1e-4, atol=1e-4)

    # 4) No positive pixels -> num_pos == 0 branch.
    pred, gt, _ = make_inputs(keys[2], (2, 4, 16, 16), peak_frac=0.0)
    out = jax.block_until_ready(focal_heatmap_loss(pred, gt))
    ref = jax.block_until_ready(_reference_loss(pred, gt))
    np.testing.assert_allclose(np.asarray(out), np.asarray(ref),
                               rtol=1e-4, atol=1e-4)

    # 5) Larger heatmap -> 2-slice grid with an odd block count: exercises the
    #    clamped overhang block + row masking on the second slice.
    pred, gt, _ = make_inputs(keys[3], (2, 17, 96, 96))
    out = jax.block_until_ready(focal_heatmap_loss(pred, gt))
    ref = jax.block_until_ready(_reference_loss(pred, gt))
    np.testing.assert_allclose(np.asarray(out), np.asarray(ref),
                               rtol=1e-4, atol=1e-4)

    # 6) 2-slice grid with exact block coverage (no masking, no clamping),
    #    with mask.
    pred, gt, mask = make_inputs(keys[4], (2, 8, 128, 128))
    out = jax.block_until_ready(focal_heatmap_loss(pred, gt, mask))
    ref = jax.block_until_ready(_reference_loss(pred, gt, mask))
    np.testing.assert_allclose(np.asarray(out), np.asarray(ref),
                               rtol=1e-4, atol=1e-4)

    print("KERNEL_OK")
</pallas_src>

<mosaic_0001>
module attributes {stable_mosaic.version = 11 : i64} {
  func.func @kernel(%arg0: i32, %arg1: i32, %arg2: memref<16x128xf32, #tpu.memory_space<vmem>>, %arg3: memref<16x128xf32, #tpu.memory_space<vmem>>, %arg4: memref<1x3x128xf32, #tpu.memory_space<vmem>>) attributes {dimension_semantics = [#tpu.dimension_semantics<parallel>, #tpu.dimension_semantics<arbitrary>], iteration_bounds = array<i64: 1, 1>, scalar_prefetch = 0 : i64, scratch_operands = 0 : i64, tpu.core_type = #tpu.core_type<tc>, window_params = [{transform_indices = @transform_0, window_bounds = array<i64: 16, 128>}, {transform_indices = @transform_1, window_bounds = array<i64: 16, 128>}, {transform_indices = @transform_2, window_bounds = array<i64: 1, 3, 128>}]} {
    %c0_i32 = arith.constant 0 : i32
    %0 = arith.cmpi eq, %arg1, %c0_i32 : i32
    %1 = arith.extui %0 : i1 to i32
    %c0_i32_0 = arith.constant 0 : i32
    %2 = arith.cmpi ne, %1, %c0_i32_0 : i32
    scf.if %2 {
      %cst_28 = arith.constant 0.000000e+00 : f32
      %52 = vector.broadcast %cst_28 : f32 to vector<3x128xf32>
      %c0_29 = arith.constant 0 : index
      %c0_30 = arith.constant 0 : index
      %c0_31 = arith.constant 0 : index
      %53 = vector.load %arg4[%c0_29, %c0_30, %c0_31] : memref<1x3x128xf32, #tpu.memory_space<vmem>>, vector<1x3x128xf32>
      %54 = vector.shape_cast %53 : vector<1x3x128xf32> to vector<3x128xf32>
      %55 = vector.shape_cast %52 : vector<3x128xf32> to vector<1x3x128xf32>
      tpu.vector_store %arg4[%c0_29, %c0_30, %c0_31], %55 {strides = array<i32>} : memref<1x3x128xf32, #tpu.memory_space<vmem>>, vector<1x3x128xf32>,
    } else {
    }
    %c0 = arith.constant 0 : index
    %c0_1 = arith.constant 0 : index
    %3 = vector.load %arg2[%c0, %c0_1] : memref<16x128xf32, #tpu.memory_space<vmem>>, vector<16x128xf32>
    %c0_2 = arith.constant 0 : index
    %c0_3 = arith.constant 0 : index
    %4 = vector.load %arg3[%c0_2, %c0_3] : memref<16x128xf32, #tpu.memory_space<vmem>>, vector<16x128xf32>
    %cst = arith.constant 1.000000e+00 : f32
    %5 = vector.broadcast %cst : f32 to vector<16x128xf32>
    %6 = arith.cmpf oeq, %4, %5 : vector<16x128xf32>
    %cst_4 = arith.constant 1.000000e+00 : f32
    %7 = vector.broadcast %cst_4 : f32 to vector<16x128xf32>
    %8 = arith.cmpf olt, %4, %7 : vector<16x128xf32>
    %cst_5 = arith.constant 1.000000e+00 : f32
    %9 = vector.broadcast %cst_5 : f32 to vector<16x128xf32>
    %10 = arith.subf %9, %3 : vector<16x128xf32>
    %cst_6 = arith.constant 1.000000e+00 : f32
    %11 = vector.broadcast %cst_6 : f32 to vector<16x128xf32>
    %12 = arith.subf %11, %4 : vector<16x128xf32>
    %13 = arith.mulf %12, %12 : vector<16x128xf32>
    %14 = arith.mulf %13, %13 : vector<16x128xf32>
    %15 = math.log %3 : vector<16x128xf32>
    %16 = arith.mulf %10, %10 : vector<16x128xf32>
    %17 = arith.mulf %15, %16 : vector<16x128xf32>
    %cst_7 = arith.constant 0.000000e+00 : f32
    %18 = vector.broadcast %cst_7 : f32 to vector<16x128xf32>
    %19 = arith.select %6, %17, %18 : vector<16x128xi1>, vector<16x128xf32>
    %20 = math.log %10 : vector<16x128xf32>
    %21 = arith.mulf %3, %3 : vector<16x128xf32>
    %22 = arith.mulf %20, %21 : vector<16x128xf32>
    %23 = arith.mulf %22, %14 : vector<16x128xf32>
    %cst_8 = arith.constant 0.000000e+00 : f32
    %24 = vector.broadcast %cst_8 : f32 to vector<16x128xf32>
    %25 = arith.select %8, %23, %24 : vector<16x128xi1>, vector<16x128xf32>
    %26 = arith.extui %6 : vector<16x128xi1> to vector<16x128xi32>
    %27 = arith.sitofp %26 : vector<16x128xi32> to vector<16x128xf32>
    %c0_9 = arith.constant 0 : index
    %c0_10 = arith.constant 0 : index
    %c0_11 = arith.constant 0 : index
    %28 = vector.load %arg4[%c0_9, %c0_10, %c0_11] : memref<1x3x128xf32, #tpu.memory_space<vmem>>, vector<1x1x128xf32>
    %29 = vector.shape_cast %28 : vector<1x1x128xf32> to vector<1x128xf32>
    %cst_12 = arith.constant dense<0.000000e+00> : vector<128xf32>
    %30 = vector.multi_reduction <add>, %19, %cst_12 [0] : vector<16x128xf32> to vector<128xf32>
    %31 = vector.shape_cast %30 : vector<128xf32> to vector<1x128xf32>
    %32 = arith.addf %29, %31 : vector<1x128xf32>
    %c0_13 = arith.constant 0 : index
    %c0_14 = arith.constant 0 : index
    %c0_15 = arith.constant 0 : index
    %33 = vector.load %arg4[%c0_13, %c0_14, %c0_15] : memref<1x3x128xf32, #tpu.memory_space<vmem>>, vector<1x1x128xf32>
    %34 = vector.shape_cast %33 : vector<1x1x128xf32> to vector<1x128xf32>
    %35 = vector.shape_cast %32 : vector<1x128xf32> to vector<1x1x128xf32>
    tpu.vector_store %arg4[%c0_13, %c0_14, %c0_15], %35 {strides = array<i32>} : memref<1x3x128xf32, #tpu.memory_space<vmem>>, vector<1x1x128xf32>,
    %c0_16 = arith.constant 0 : index
    %c1 = arith.constant 1 : index
    %c0_17 = arith.constant 0 : index
    %36 = vector.load %arg4[%c0_16, %c1, %c0_17] : memref<1x3x128xf32, #tpu.memory_space<vmem>>, vector<1x1x128xf32>
    %37 = vector.shape_cast %36 : vector<1x1x128xf32> to vector<1x128xf32>
    %cst_18 = arith.constant dense<0.000000e+00> : vector<128xf32>
    %38 = vector.multi_reduction <add>, %25, %cst_18 [0] : vector<16x128xf32> to vector<128xf32>
    %39 = vector.shape_cast %38 : vector<128xf32> to vector<1x128xf32>
    %40 = arith.addf %37, %39 : vector<1x128xf32>
    %c0_19 = arith.constant 0 : index
    %c1_20 = arith.constant 1 : index
    %c0_21 = arith.constant 0 : index
    %41 = vector.load %arg4[%c0_19, %c1_20, %c0_21] : memref<1x3x128xf32, #tpu.memory_space<vmem>>, vector<1x1x128xf32>
    %42 = vector.shape_cast %41 : vector<1x1x128xf32> to vector<1x128xf32>
    %43 = vector.shape_cast %40 : vector<1x128xf32> to vector<1x1x128xf32>
    tpu.vector_store %arg4[%c0_19, %c1_20, %c0_21], %43 {strides = array<i32>} : memref<1x3x128xf32, #tpu.memory_space<vmem>>, vector<1x1x128xf32>,
    %c0_22 = arith.constant 0 : index
    %c2 = arith.constant 2 : index
    %c0_23 = arith.constant 0 : index
    %44 = vector.load %arg4[%c0_22, %c2, %c0_23] : memref<1x3x128xf32, #tpu.memory_space<vmem>>, vector<1x1x128xf32>
    %45 = vector.shape_cast %44 : vector<1x1x128xf32> to vector<1x128xf32>
    %cst_24 = arith.constant dense<0.000000e+00> : vector<128xf32>
    %46 = vector.multi_reduction <add>, %27, %cst_24 [0] : vector<16x128xf32> to vector<128xf32>
    %47 = vector.shape_cast %46 : vector<128xf32> to vector<1x128xf32>
    %48 = arith.addf %45, %47 : vector<1x128xf32>
    %c0_25 = arith.constant 0 : index
    %c2_26 = arith.constant 2 : index
    %c0_27 = arith.constant 0 : index
    %49 = vector.load %arg4[%c0_25, %c2_26, %c0_27] : memref<1x3x128xf32, #tpu.memory_space<vmem>>, vector<1x1x128xf32>
    %50 = vector.shape_cast %49 : vector<1x1x128xf32> to vector<1x128xf32>
    %51 = vector.shape_cast %48 : vector<1x128xf32> to vector<1x1x128xf32>
    tpu.vector_store %arg4[%c0_25, %c2_26, %c0_27], %51 {strides = array<i32>} : memref<1x3x128xf32, #tpu.memory_space<vmem>>, vector<1x1x128xf32>,
    return
  }
  func.func @transform_0(%arg0: i32, %arg1: i32) -> (i32, i32) {
    %c1_i32 = arith.constant 1 : i32
    %0 = arith.muli %arg0, %c1_i32 : i32
    %1 = arith.addi %0, %arg1 : i32
    %c0_i32 = arith.constant 0 : i32
    %c0_i32_0 = arith.constant 0 : i32
    return %1, %c0_i32 : i32, i32
  }
  func.func @transform_1(%arg0: i32, %arg1: i32) -> (i32, i32) {
    %c1_i32 = arith.constant 1 : i32
    %0 = arith.muli %arg0, %c1_i32 : i32
    %1 = arith.addi %0, %arg1 : i32
    %c0_i32 = arith.constant 0 : i32
    %c0_i32_0 = arith.constant 0 : i32
    return %1, %c0_i32 : i32, i32
  }
  func.func @transform_2(%arg0: i32, %arg1: i32) -> (i32, i32, i32) {
    %c0_i32 = arith.constant 0 : i32
    %c0_i32_0 = arith.constant 0 : i32
    %c0_i32_1 = arith.constant 0 : i32
    return %arg0, %c0_i32, %c0_i32_0 : i32, i32, i32
  }
}

</mosaic_0001>

<llo_original>
// kernel: _focal_heatmap_loss_impl.1
$region0: #{_focal_heatmap_loss_impl.1}
  #allocation0 [shape = 'u32[]', space=smem, size = 0x4, offset = 0x4, fixed_abs, tag = 'smem constant byte address 0x4 - core index']
  #allocation1 [shape = 'u32[144,128]{1,0:T(1,128)}', space=vmem, size = 0x12000, scoped, tag = 'internal scratch']
  %s0 = inlined_call_operand.vmem [shape: f32[16,128], index: 0, kind: input, shape index: {}]
  %s1 = inlined_call_operand.vmem [shape: f32[16,128], index: 1, kind: input, shape index: {}]
  %s2 = inlined_call_operand.vmem [shape: f32[1,3,128], index: 2, kind: output, shape index: {}]
  %s3 = sld [smem:[#allocation0]]
  $region22: #{_focal_heatmap_loss_impl.1} parent=0
    _
  %s5 = ssub.s32 1, %s3
  %s6 = scalar_select 0, %s5, %s3
  // Predicated region
  $region2: #{_focal_heatmap_loss_impl.1} parent=0 // pred_check
    _
  $region3: #{_focal_heatmap_loss_impl.1} parent=0 // pred_check_branch
    %8 = sbr.rel (0) target = $region5
  $region4: #{_focal_heatmap_loss_impl.1} parent=0 // pred_region
    %s9 = sadd.s32 0, 0
    %s10 = smul.u32 2, %s9
    %p11 = scmp.lt.s32.totalorder %s10, 1
    %s12 = scalar_select %p11, %s10, 1
    %s13 = smul.addr %s12, 8
    %s14 = scalar_lea.vmem %s0, %s13
    %s15 = sadd.s32 0, 0
    %s16 = smul.u32 2, %s15
  $region5: #{_focal_heatmap_loss_impl.1} parent=0 // pred_fallthru
    _
  // Predicated region
  $region6: #{_focal_heatmap_loss_impl.1} parent=0 // pred_check
    _
  $region7: #{_focal_heatmap_loss_impl.1} parent=0 // pred_check_branch
    %18 = sbr.rel (0) target = $region9
  $region8: #{_focal_heatmap_loss_impl.1} parent=0 // pred_region
    %s19 = sadd.s32 0, 0
    %s20 = smul.u32 2, %s19
    %p21 = scmp.lt.s32.totalorder %s20, 1
    %s22 = scalar_select %p21, %s20, 1
    %s23 = smul.addr %s22, 8
    %s24 = scalar_lea.vmem %s1, %s23
    %s25 = sadd.s32 0, 0
    %s26 = smul.u32 2, %s25
  $region9: #{_focal_heatmap_loss_impl.1} parent=0 // pred_fallthru
    _
  %s27 = sadd.s32 0, 0
  %s28 = smul.u32 2, %s27
  %p29 = scmp.lt.s32.totalorder %s28, 1
  %s30 = scalar_select %p29, %s28, 1
  %s31 = smul.addr %s30, 8
  %s32 = scalar_lea.vmem %s0, %s31
  %s33 = sadd.s32 0, 0
  %s34 = smul.u32 2, %s33
  %p35 = scmp.lt.s32.totalorder %s34, 1
  %s36 = scalar_select %p35, %s34, 1
  %s37 = smul.addr %s36, 8
  %s38 = scalar_lea.vmem %s1, %s37
  %s39 = sadd.s32 0, 0
  %s40 = smul.u32 2, %s39
  %p41 = scmp.lt.s32.totalorder %s40, 1
  %s42 = scalar_select %p41, %s40, 1
  %s43 = smul.addr %s42, 8
  %s44 = scalar_lea.vmem %s0, %s43
  %s45 = sadd.s32 0, 0
  %s46 = smul.u32 2, %s45
  %s47 = sadd.s32 0, 0
  %s48 = smul.u32 2, %s47
  %p49 = scmp.lt.s32.totalorder %s48, 1
  %s50 = scalar_select %p49, %s48, 1
  %s51 = smul.addr %s50, 8
  %s52 = scalar_lea.vmem %s1, %s51
  %s53 = sadd.s32 0, 0
  %s54 = smul.u32 2, %s53
  %p55 = scmp.eq.s32.totalorder 0, 0
  // Predicated region
  $region10: #{_focal_heatmap_loss_impl.1} parent=0 // pred_check
    %p56 = pneg %p55
  $region11: #{_focal_heatmap_loss_impl.1} parent=0 // pred_check_branch
    %58 = sbr.rel (%p56) target = $region13
  $region12: #{_focal_heatmap_loss_impl.1} parent=0 // pred_region
    %59 = vst [vmem:[%s2] sm:$0x7] 0.0
  $region13: #{_focal_heatmap_loss_impl.1} parent=0 // pred_fallthru
    _
  %v60 = vld [vmem:[%s44] sm:$0xff]
  %v61 = vld [vmem:[%s44 + $0x8] sm:$0xff]
  %v62 = vld [vmem:[%s52] sm:$0xff]
  %v63 = vld [vmem:[%s52 + $0x8] sm:$0xff]
  %vm64 = vcmp.eq.f32.partialorder %v62, 1.0
  %vm65 = vcmp.eq.f32.partialorder %v63, 1.0
  %vm66 = vcmp.lt.f32.partialorder %v62, 1.0
  %vm67 = vcmp.lt.f32.partialorder %v63, 1.0
  %v68 = vsub.f32 1.0, %v60
  %v69 = vsub.f32 1.0, %v61
  %v70 = vsub.f32 1.0, %v62
  %v71 = vsub.f32 1.0, %v63
  %v72 = vmul.f32 %v70, %v70
  %v73 = vmul.f32 %v71, %v71
  %v74 = vmul.f32 %v72, %v72
  %v75 = vmul.f32 %v73, %v73
  %v76 = vlog2.pop %v60
  %v77 = vmul.f32 %v76, 0.6931472
  %v78 = vlog2.pop %v61
  %v79 = vmul.f32 %v78, 0.6931472
  %v80 = vmul.f32 %v68, %v68
  %v81 = vmul.f32 %v69, %v69
  %v82 = vmul.f32 %v77, %v80
  %v83 = vmul.f32 %v79, %v81
  %v84 = vsel %vm64, %v82, 0.0
  %v85 = vsel %vm65, %v83, 0.0
  %v86 = vlog2.pop %v68
  %v87 = vmul.f32 %v86, 0.6931472
  %v88 = vlog2.pop %v69
  %v89 = vmul.f32 %v88, 0.6931472
  %v90 = vmul.f32 %v60, %v60
  %v91 = vmul.f32 %v61, %v61
  %v92 = vmul.f32 %v87, %v90
  %v93 = vmul.f32 %v89, %v91
  %v94 = vmul.f32 %v92, %v74
  %v95 = vmul.f32 %v93, %v75
  %v96 = vsel %vm66, %v94, 0.0
  %v97 = vsel %vm67, %v95, 0.0
  %v98 = vsel %vm64, 1, 0
  %v99 = vsel %vm65, 1, 0
  %v100 = vcvt.s32.f32 %v98
  %v101 = vcvt.s32.f32 %v99
  %v102 = vld [vmem:[%s2] sm:$0x1]
  %v103 = vadd.f32 %v84, %v85
  %v104 = vrot.slane %v103, 4
  %v105 = vadd.f32 %v103, %v104
  %v106 = vrot.slane %v105, 2
  %v107 = vadd.f32 %v105, %v106
  %v108 = vrot.slane %v107, 1
  %v109 = vadd.f32 %v107, %v108
  %v110 = vadd.f32 %v102, %v109
  %111 = vst [vmem:[%s2] sm:$0x1] %v110
  %v112 = vld [vmem:[%s2 + $0x1] sm:$0x1]
  %v113 = vadd.f32 %v96, %v97
  %v114 = vrot.slane %v113, 4
  %v115 = vadd.f32 %v113, %v114
  %v116 = vrot.slane %v115, 2
  %v117 = vadd.f32 %v115, %v116
  %v118 = vrot.slane %v117, 1
  %v119 = vadd.f32 %v117, %v118
  %v120 = vadd.f32 %v112, %v119
  %121 = vst [vmem:[%s2 + $0x1] sm:$0x1] %v120
  %v122 = vld [vmem:[%s2 + $0x2] sm:$0x1]
  %v123 = vadd.f32 %v100, %v101
  %v124 = vrot.slane %v123, 4
  %v125 = vadd.f32 %v123, %v124
  %v126 = vrot.slane %v125, 2
  %v127 = vadd.f32 %v125, %v126
  %v128 = vrot.slane %v127, 1
  %v129 = vadd.f32 %v127, %v128
  %v130 = vadd.f32 %v122, %v129
  %131 = vst [vmem:[%s2 + $0x2] sm:$0x1] %v130
  // Predicated region
  $region14: #{_focal_heatmap_loss_impl.1} parent=0 // pred_check
    _
  $region15: #{_focal_heatmap_loss_impl.1} parent=0 // pred_check_branch
    %133 = sbr.rel (0) target = $region17
  $region16: #{_focal_heatmap_loss_impl.1} parent=0 // pred_region
    _
  $region17: #{_focal_heatmap_loss_impl.1} parent=0 // pred_fallthru
    _
  // Predicated region
  $region18: #{_focal_heatmap_loss_impl.1} parent=0 // pred_check
    _
  $region19: #{_focal_heatmap_loss_impl.1} parent=0 // pred_check_branch
    %135 = sbr.rel (0) target = $region21
  $region20: #{_focal_heatmap_loss_impl.1} parent=0 // pred_region
    _
  $region21: #{_focal_heatmap_loss_impl.1} parent=0 // pred_fallthru
    _

</llo_original>
